<compile_context>
chip_gen: v5e
topology: v5e:2x2
jax: 0.10.0
libtpu: 0.0.40
codegen_flags: <defaults>
</compile_context>

<pallas_src>
import jax
import jax.numpy as jnp
from jax.experimental import pallas as pl
from jax.experimental.pallas import tpu as pltpu


def _denorm_kernel(std_ref, mean_ref, img_ref, out_ref):
    # std_ref / mean_ref: VMEM (TM, 1) float32; img_ref / out_ref: (TM, TK).
    # Compute in f32 (constants stay full precision), single cast on store.
    x = img_ref[...].astype(jnp.float32)
    out_ref[...] = (x * std_ref[...] + mean_ref[...]).astype(out_ref.dtype)


def _round_down(x, unit):
    return max(unit, (x // unit) * unit)


def _largest_divisor_tile(dim, unit, cap):
    """Largest multiple of `unit` that divides `dim` and is <= cap.

    Assumes dim % unit == 0 (so the result is always a valid tile).
    """
    best = unit
    t = unit
    limit = min(dim, cap)
    while t <= limit:
        if dim % t == 0:
            best = t
        t += unit
    return best


def _vmem_capacity_bytes():
    """Per-generation VMEM capacity (v5e/v6e: 128 MiB, v7x: 64 MiB per TC)."""
    try:
        info = pltpu.get_tpu_info()
        cap = getattr(info, "vmem_capacity_bytes", None)
        if cap:
            return int(cap)
    except Exception:
        pass
    return 64 << 20  # conservative (v7x-sized) default


def denormalize(img, std, mean, *, donate=False):
    """img: (N, C, H, W); std/mean: (C,). Returns img * std[c] + mean[c]."""
    N, C, H, W = img.shape
    M, K = N * C, H * W
    itemsize = jnp.dtype(img.dtype).itemsize

    # Lane-dense 2-D view; per-row scale/offset kept in f32 (a few KB at most).
    x = img.reshape(M, K)
    std_rows = jnp.tile(std.astype(jnp.float32), N).reshape(M, 1)
    mean_rows = jnp.tile(mean.astype(jnp.float32), N).reshape(M, 1)

    # ---- per-generation VMEM budgets -----------------------------------
    vmem_cap = _vmem_capacity_bytes()
    # Stay well under physical VMEM: 48 MiB on the 64-MiB chip (v7x),
    # 64 MiB on the 128-MiB chips (v5e/v6e).
    vmem_limit = int(min(64 << 20, (vmem_cap * 3) // 4))
    # In + out image tiles are each double-buffered (4 live image blocks plus
    # the tiny std/mean rows) -> per-block budget ~ limit/6, capped at 4 MiB
    # on the 64-MiB chip and 8 MiB on the 128-MiB chips.
    block_budget = min(8 << 20 if vmem_cap >= (96 << 20) else 4 << 20,
                       vmem_limit // 6)

    # Sublane unit is dtype-dependent: f32 -> 8, bf16/f16 -> 16, int8/fp8 -> 32.
    sub_unit = max(8, 32 // itemsize)

    # ---- lane tile (as wide as the budget allows, multiple of 128) ------
    if K < 128:
        tk = K                                          # full extent (tiny rows)
    else:
        tk_cap = _round_down(block_budget // (sub_unit * itemsize), 128)
        if K % 128 == 0:
            tk = _largest_divisor_tile(K, 128, tk_cap)  # even, unmasked blocks
        else:
            tk = min(_round_down(K, 128), tk_cap)       # cdiv grid, masked edge

    # ---- sublane tile (fill the block budget with rows) -----------------
    max_rows = _round_down(block_budget // max(1, tk * itemsize), sub_unit)
    if M < sub_unit:
        tm = M                                          # full extent
    elif M % sub_unit == 0:
        tm = _largest_divisor_tile(M, sub_unit, max_rows)
    else:
        tm = min(_round_down(M, sub_unit), max_rows)    # cdiv grid, masked edge

    grid_m, grid_k = pl.cdiv(M, tm), pl.cdiv(K, tk)

    # v7x megacore: guarantee >= 2 steps on a parallel axis so the grid can be
    # sharded across the 2 TensorCores (no-op on single-TC v5e/v6e).
    if grid_m * grid_k < 2 and M >= 2 * sub_unit:
        tm = _round_down(pl.cdiv(M, 2), sub_unit)
        grid_m = pl.cdiv(M, tm)

    grid = (grid_m, grid_k)

    out = pl.pallas_call(
        _denorm_kernel,
        out_shape=jax.ShapeDtypeStruct((M, K), img.dtype),
        grid_spec=pltpu.PrefetchScalarGridSpec(
            num_scalar_prefetch=0,
            grid=grid,
            in_specs=[
                pl.BlockSpec((tm, 1), lambda i, j: (i, 0)),   # per-row std (f32)
                pl.BlockSpec((tm, 1), lambda i, j: (i, 0)),   # per-row mean (f32)
                pl.BlockSpec((tm, tk), lambda i, j: (i, j)),  # image tile
            ],
            out_specs=pl.BlockSpec((tm, tk), lambda i, j: (i, j)),
        ),
        compiler_params=pltpu.CompilerParams(
            dimension_semantics=("parallel", "parallel"),
            vmem_limit_bytes=vmem_limit,
        ),
        input_output_aliases=({2: 0} if donate else {}),
    )(std_rows, mean_rows, x)

    return out.reshape(N, C, H, W)


if __name__ == "__main__":
    # Deterministic parameters from the module's __init__ (ImageNet std/mean).
    std = jnp.array([0.229, 0.224, 0.225], dtype=jnp.float32)
    mean = jnp.array([0.485, 0.456, 0.406], dtype=jnp.float32)

    # Small example input consistent with the forward: (N, C=3, H, W).
    key = jax.random.PRNGKey(0)
    img = jax.random.normal(key, (2, 3, 16, 16), dtype=jnp.float32)

    out = denormalize(img, std, mean)
    out = jax.block_until_ready(out)

    # Reference (plain JAX, mirrors PyTorch (C,1,1) broadcasting).
    ref = img * std.reshape(3, 1, 1) + mean.reshape(3, 1, 1)
    assert out.shape == img.shape
    assert jnp.allclose(out, ref, atol=1e-6), "mismatch vs reference"

    print("KERNEL_OK")
</pallas_src>

<mosaic_0001>
module attributes {stable_mosaic.version = 11 : i64} {
  func.func @_denorm_kernel(%arg0: i32, %arg1: i32, %arg2: memref<6x1xf32, #tpu.memory_space<vmem>>, %arg3: memref<6x1xf32, #tpu.memory_space<vmem>>, %arg4: memref<6x256xf32, #tpu.memory_space<vmem>>, %arg5: memref<6x256xf32, #tpu.memory_space<vmem>>) attributes {dimension_semantics = [#tpu.dimension_semantics<parallel>, #tpu.dimension_semantics<parallel>], iteration_bounds = array<i64: 1, 1>, scalar_prefetch = 0 : i64, scratch_operands = 0 : i64, tpu.core_type = #tpu.core_type<tc>, window_params = [{transform_indices = @transform_0, window_bounds = array<i64: 6, 1>}, {transform_indices = @transform_1, window_bounds = array<i64: 6, 1>}, {transform_indices = @transform_2, window_bounds = array<i64: 6, 256>}, {transform_indices = @transform_3, window_bounds = array<i64: 6, 256>}]} {
    %c0 = arith.constant 0 : index
    %c0_0 = arith.constant 0 : index
    %0 = vector.load %arg4[%c0, %c0_0] : memref<6x256xf32, #tpu.memory_space<vmem>>, vector<6x256xf32>
    %c0_1 = arith.constant 0 : index
    %c0_2 = arith.constant 0 : index
    %1 = vector.load %arg2[%c0_1, %c0_2] : memref<6x1xf32, #tpu.memory_space<vmem>>, vector<6x1xf32>
    %2 = vector.broadcast %1 : vector<6x1xf32> to vector<6x256xf32>
    %3 = arith.mulf %0, %2 : vector<6x256xf32>
    %c0_3 = arith.constant 0 : index
    %c0_4 = arith.constant 0 : index
    %4 = vector.load %arg3[%c0_3, %c0_4] : memref<6x1xf32, #tpu.memory_space<vmem>>, vector<6x1xf32>
    %5 = vector.broadcast %4 : vector<6x1xf32> to vector<6x256xf32>
    %6 = arith.addf %3, %5 : vector<6x256xf32>
    %c0_5 = arith.constant 0 : index
    %c0_6 = arith.constant 0 : index
    %7 = vector.load %arg5[%c0_5, %c0_6] : memref<6x256xf32, #tpu.memory_space<vmem>>, vector<6x256xf32>
    tpu.vector_store %arg5[%c0_5, %c0_6], %6 {strides = array<i32>} : memref<6x256xf32, #tpu.memory_space<vmem>>, vector<6x256xf32>,
    return
  }
  func.func @transform_0(%arg0: i32, %arg1: i32) -> (i32, i32) {
    %c0_i32 = arith.constant 0 : i32
    %c0_i32_0 = arith.constant 0 : i32
    return %arg0, %c0_i32 : i32, i32
  }
  func.func @transform_1(%arg0: i32, %arg1: i32) -> (i32, i32) {
    %c0_i32 = arith.constant 0 : i32
    %c0_i32_0 = arith.constant 0 : i32
    return %arg0, %c0_i32 : i32, i32
  }
  func.func @transform_2(%arg0: i32, %arg1: i32) -> (i32, i32) {
    %c0_i32 = arith.constant 0 : i32
    return %arg0, %arg1 : i32, i32
  }
  func.func @transform_3(%arg0: i32, %arg1: i32) -> (i32, i32) {
    %c0_i32 = arith.constant 0 : i32
    return %arg0, %arg1 : i32, i32
  }
}

</mosaic_0001>

<llo_original>
// kernel: tpu_custom_call.1
$region0: #{tpu_custom_call.1}
  #allocation0 [shape = 'u32[]', space=smem, size = 0x4, offset = 0x4, fixed_abs, tag = 'smem constant byte address 0x4 - core index']
  #allocation1 [shape = 'u32[72,128]{1,0:T(1,128)}', space=vmem, size = 0x9000, scoped, tag = 'internal scratch']
  %s0 = inlined_call_operand.vmem [shape: f32[6,1], index: 0, kind: input, shape index: {}]
  %s1 = inlined_call_operand.vmem [shape: f32[6,1], index: 1, kind: input, shape index: {}]
  %s2 = inlined_call_operand.vmem [shape: f32[6,256], index: 2, kind: input, shape index: {}]
  %s3 = inlined_call_operand.hbm [shape: f32[6,256], index: 3, kind: output, shape index: {}]
  %s4 = sld [smem:[#allocation0]]
  $region22: #{tpu_custom_call.1} parent=0
    _
  %s6 = ssub.s32 1, %s4
  %s7 = scalar_select 0, %s6, %s4
  $region1: #{tpu_custom_call.1} parent=0
    #allocation2 [shape = 'u8[8192]{0}', space=vmem, size = 0x2000, scoped, tag = 'output window, operand 0, single buffered']
    #allocation3 [shape = 's32[1]{0}', space=sflag, size = 0x4, scoped, tag = 'scoped memory for tpu_custom_call.1']
    %8 = vsyncpa [#allocation3], 0
    // Predicated region
    $region2: #{tpu_custom_call.1} parent=1 // pred_check
      _
    $region3: #{tpu_custom_call.1} parent=1 // pred_check_branch
      %10 = sbr.rel (0) target = $region5
    $region4: #{tpu_custom_call.1} parent=1 // pred_region
      _
    $region5: #{tpu_custom_call.1} parent=1 // pred_fallthru
      _
    // Predicated region
    $region6: #{tpu_custom_call.1} parent=1 // pred_check
      _
    $region7: #{tpu_custom_call.1} parent=1 // pred_check_branch
      %12 = sbr.rel (0) target = $region9
    $region8: #{tpu_custom_call.1} parent=1 // pred_region
      _
    $region9: #{tpu_custom_call.1} parent=1 // pred_fallthru
      _
    // Predicated region
    $region10: #{tpu_custom_call.1} parent=1 // pred_check
      _
    $region11: #{tpu_custom_call.1} parent=1 // pred_check_branch
      %14 = sbr.rel (0) target = $region13
    $region12: #{tpu_custom_call.1} parent=1 // pred_region
      _
    $region13: #{tpu_custom_call.1} parent=1 // pred_fallthru
      _
    %v15 = vld [vmem:[%s2] sm:$0x3f]
    %v16 = vld [vmem:[%s2 + $0x8] sm:$0x3f]
    %v17 = vld [vmem:[%s0] sm:$0x3f]
    %19 = vset.pattern.permute.xlu0 0
    %20 = vperm.xlu0 %19, %v17
    %v21 = vpop.permute.xlu0 %20
    %v23 = vmul.f32 %v15, %v21
    %v24 = vmul.f32 %v16, %v21
    %v25 = vld [vmem:[%s1] sm:$0x3f]
    %27 = vset.pattern.permute.xlu0 0
    %28 = vperm.xlu0 %27, %v25
    %v29 = vpop.permute.xlu0 %28
    %v31 = vadd.f32 %v23, %v29
    %v32 = vadd.f32 %v24, %v29
    %33 = vst [vmem:[#allocation2] sm:$0x3f] %v31
    %34 = vst [vmem:[#allocation2 + $0x8] sm:$0x3f] %v32
    // Predicated region
    $region14: #{tpu_custom_call.1} parent=1 // pred_check
      _
    $region15: #{tpu_custom_call.1} parent=1 // pred_check_branch
      %36 = sbr.rel (0) target = $region17
    $region16: #{tpu_custom_call.1} parent=1 // pred_region
      %38 = vsyncadd [#allocation3], 0
      %s40 = sshll.u32 [#allocation2], 4
      %s41 = int_to_ptr.vmem [resolvable:$true] %s40
      %s42 = sshll.u32 %s3, 4
      %s43 = int_to_ptr.hbm [resolvable:$true] %s42
      %45 = dma.vmem_to_hbm [thread:$0]  %s41, 256, %s43, [#allocation3]
    $region17: #{tpu_custom_call.1} parent=1 // pred_fallthru
      _
    // Predicated region
    $region18: #{tpu_custom_call.1} parent=1 // pred_check
      _
    $region19: #{tpu_custom_call.1} parent=1 // pred_check_branch
      %47 = sbr.rel (0) target = $region21
    $region20: #{tpu_custom_call.1} parent=1 // pred_region
      %49 = dma.done [#allocation3], 256
    $region21: #{tpu_custom_call.1} parent=1 // pred_fallthru
      _
    %50 = vsyncpa [#allocation3], 1

</llo_original>
